<compile_context>
chip_gen: v5e
topology: v5e:2x2
jax: 0.10.0
libtpu: 0.0.40
codegen_flags: <defaults>
</compile_context>

<pallas_src>
import math
import functools

import jax
import jax.numpy as jnp
from jax.experimental import pallas as pl
from jax.experimental.pallas import tpu as pltpu


def _mha_kernel(x_ref, wqkv_ref, wo_ref, out_ref, *,
                batch, n_query, n_heads, pad, norm_factor):
    # x_ref    : (B*N, D)
    # wqkv_ref : (D, 3*H*P)  column layout: [q_h0..q_hH-1 | k_h0.. | v_h0..],
    #            each head padded to P = 128 lanes (zeros past key/val dim).
    # wo_ref   : (H*P, E)    rows padded with zeros to match the head layout.
    # out_ref  : (B*N, E)
    B, N, H, P = batch, n_query, n_heads, pad

    x = x_ref[...].astype(jnp.float32)
    wqkv = wqkv_ref[...].astype(jnp.float32)
    wo = wo_ref[...].astype(jnp.float32)

    # One fused projection matmul for all of Q, K, V across all heads.
    qkv = jnp.dot(x, wqkv, preferred_element_type=jnp.float32)   # (B*N, 3*H*P)

    # Diagonal mask (compat[:, :, i, i] = -inf in the PyTorch module).
    row = jax.lax.broadcasted_iota(jnp.int32, (N, N), 0)
    col = jax.lax.broadcasted_iota(jnp.int32, (N, N), 1)
    diag = row == col

    # Contract the last dims of Q and K directly (no explicit K.T transpose).
    contract_last = (((1,), (1,)), ((), ()))

    per_batch = []
    for b in range(B):                       # static unroll, B is tiny
        r0 = b * N
        heads_b = []
        for h in range(H):                   # static unroll
            # Lane-tile aligned slices: offsets are multiples of 128.
            qh = qkv[r0:r0 + N, h * P:(h + 1) * P]                    # (N, P)
            kh = qkv[r0:r0 + N, (H + h) * P:(H + h + 1) * P]          # (N, P)
            vh = qkv[r0:r0 + N, (2 * H + h) * P:(2 * H + h + 1) * P]  # (N, P)

            s = norm_factor * jax.lax.dot_general(
                qh, kh, contract_last,
                preferred_element_type=jnp.float32)                   # (N, N)
            s = jnp.where(diag, -jnp.inf, s)

            m = jnp.max(s, axis=-1, keepdims=True)
            p = jnp.exp(s - m)
            # approx=False keeps the result bit-close to the reference
            # (approx=True -> EUP slot, ~1e-4 rel, if tolerance is loosened).
            inv = pl.reciprocal(jnp.sum(p, axis=-1, keepdims=True), approx=False)
            attn = p * inv

            heads_b.append(jnp.dot(attn, vh,
                                   preferred_element_type=jnp.float32))  # (N, P)

        # Concatenating full 128-lane tiles is plain vreg placement (no XLU).
        per_batch.append(jnp.concatenate(heads_b, axis=-1))              # (N, H*P)

    heads_flat = (jnp.concatenate(per_batch, axis=0)
                  if B > 1 else per_batch[0])                            # (B*N, H*P)

    # Single stacked output projection == concat-then-mm in PyTorch
    # (padded rows of wo are zeros, padded columns of heads_flat are zeros).
    out = jnp.dot(heads_flat, wo, preferred_element_type=jnp.float32)    # (B*N, E)
    out_ref[...] = out.astype(out_ref.dtype)


def mha_forward(q, W_query, W_key, W_val, W_out):
    """Self-attention forward (h = q, mask = None) of the PyTorch module."""
    B, N, D = q.shape
    H, _, Kd = W_query.shape
    Vd = W_val.shape[-1]
    E = W_out.shape[-1]

    # graph_size == 1 early exit: the PyTorch module returns zeros.
    if N == 1:
        return jnp.zeros((B, N, E), q.dtype)

    P = 128  # lane-tile padded per-head width

    def pad_heads(w, inner):
        # (H, D, inner) -> (D, H*P), each head in its own 128-lane tile.
        w_pad = jnp.pad(w, ((0, 0), (0, 0), (0, P - inner)))   # (H, D, P)
        return jnp.transpose(w_pad, (1, 0, 2)).reshape(D, H * P)

    wq_pad = pad_heads(W_query, Kd)
    wk_pad = pad_heads(W_key, Kd)
    wv_pad = pad_heads(W_val, Vd)
    w_qkv = jnp.concatenate([wq_pad, wk_pad, wv_pad], axis=1)   # (D, 3*H*P)

    # Output projection rows padded with zeros to match the padded head layout.
    wo_pad = jnp.pad(W_out, ((0, 0), (0, P - Vd), (0, 0))).reshape(H * P, E)

    # Batch flatten done once in the wrapper (kernel sees clean 2-D blocks).
    x2d = q.reshape(B * N, D)

    kernel = functools.partial(_mha_kernel, batch=B, n_query=N, n_heads=H,
                               pad=P, norm_factor=1.0 / math.sqrt(Kd))

    grid_spec = pltpu.PrefetchScalarGridSpec(
        num_scalar_prefetch=0,
        grid=(1,),   # single step: whole problem fits one VMEM-resident block
        in_specs=[
            pl.BlockSpec((B * N, D), lambda i: (0, 0)),
            pl.BlockSpec((D, 3 * H * P), lambda i: (0, 0)),
            pl.BlockSpec((H * P, E), lambda i: (0, 0)),
        ],
        out_specs=pl.BlockSpec((B * N, E), lambda i: (0, 0)),
    )

    out2d = pl.pallas_call(
        kernel,
        out_shape=jax.ShapeDtypeStruct((B * N, E), q.dtype),
        grid_spec=grid_spec,
        compiler_params=pltpu.CompilerParams(
            dimension_semantics=("arbitrary",),
            vmem_limit_bytes=32 * 1024 * 1024),
    )(x2d, w_qkv, wo_pad)

    return out2d.reshape(B, N, E)


def mha_reference(q, W_query, W_key, W_val, W_out):
    """Plain-JAX transcription of the PyTorch forward (h=q, mask=None)."""
    B, N, D = q.shape
    H, _, Kd = W_query.shape
    Vd = W_val.shape[-1]
    E = W_out.shape[-1]
    norm = 1.0 / math.sqrt(Kd)

    qflat = q.reshape(-1, D)
    Q = jnp.matmul(qflat, W_query).reshape(H, B, N, Kd)
    K = jnp.matmul(qflat, W_key).reshape(H, B, N, Kd)
    V = jnp.matmul(qflat, W_val).reshape(H, B, N, Vd)

    compat = norm * jnp.matmul(Q, jnp.swapaxes(K, 2, 3))     # (H, B, N, N)
    eye = jnp.eye(N, dtype=bool)
    compat = jnp.where(eye[None, None], -jnp.inf, compat)
    attn = jax.nn.softmax(compat, axis=-1)
    heads = jnp.matmul(attn, V)                              # (H, B, N, Vd)
    out = jnp.matmul(
        jnp.transpose(heads, (1, 2, 0, 3)).reshape(-1, H * Vd),
        W_out.reshape(H * Vd, E),
    ).reshape(B, N, E)
    return out


if __name__ == "__main__":
    # Small shapes consistent with the module's forward.
    n_heads = 4
    input_dim = 16
    embed_dim = 32
    key_dim = val_dim = embed_dim // n_heads      # 8
    batch = 2
    graph_size = 8                                # n_query == graph_size

    key = jax.random.PRNGKey(0)
    k_q, k_wq, k_wk, k_wv, k_wo = jax.random.split(key, 5)

    # Deterministic "init_parameters": uniform(-stdv, stdv), stdv = 1/sqrt(last dim)
    def uinit(k, shape):
        stdv = 1.0 / math.sqrt(shape[-1])
        return jax.random.uniform(k, shape, jnp.float32, -stdv, stdv)

    W_query = uinit(k_wq, (n_heads, input_dim, key_dim))
    W_key = uinit(k_wk, (n_heads, input_dim, key_dim))
    W_val = uinit(k_wv, (n_heads, input_dim, val_dim))
    W_out = uinit(k_wo, (n_heads, key_dim, embed_dim))

    q = jax.random.normal(k_q, (batch, graph_size, input_dim), jnp.float32)

    out = mha_forward(q, W_query, W_key, W_val, W_out)
    out = jax.block_until_ready(out)

    ref = mha_reference(q, W_query, W_key, W_val, W_out)
    assert out.shape == (batch, graph_size, embed_dim)
    assert jnp.allclose(out, ref, atol=1e-5, rtol=1e-5), (
        "mismatch vs reference: max abs err = "
        f"{float(jnp.max(jnp.abs(out - ref)))}")

    print("KERNEL_OK")
</pallas_src>

<mosaic_0001>
module attributes {stable_mosaic.version = 11 : i64} {
  func.func @_mha_kernel(%arg0: i32, %arg1: memref<16x16xf32, #tpu.memory_space<vmem>>, %arg2: memref<16x1536xf32, #tpu.memory_space<vmem>>, %arg3: memref<512x32xf32, #tpu.memory_space<vmem>>, %arg4: memref<16x32xf32, #tpu.memory_space<vmem>>) attributes {dimension_semantics = [#tpu.dimension_semantics<arbitrary>], iteration_bounds = array<i64: 1>, scalar_prefetch = 0 : i64, scratch_operands = 0 : i64, tpu.core_type = #tpu.core_type<tc>, window_params = [{pipeline_mode = #tpu.pipeline_mode<synchronous>, transform_indices = @transform_0, window_bounds = array<i64: 16, 16>}, {pipeline_mode = #tpu.pipeline_mode<synchronous>, transform_indices = @transform_1, window_bounds = array<i64: 16, 1536>}, {pipeline_mode = #tpu.pipeline_mode<synchronous>, transform_indices = @transform_2, window_bounds = array<i64: 512, 32>}, {pipeline_mode = #tpu.pipeline_mode<synchronous>, transform_indices = @transform_3, window_bounds = array<i64: 16, 32>}]} {
    %c0 = arith.constant 0 : index
    %c0_0 = arith.constant 0 : index
    %0 = vector.load %arg1[%c0, %c0_0] : memref<16x16xf32, #tpu.memory_space<vmem>>, vector<16x16xf32>
    %c0_1 = arith.constant 0 : index
    %c0_2 = arith.constant 0 : index
    %1 = vector.load %arg2[%c0_1, %c0_2] : memref<16x1536xf32, #tpu.memory_space<vmem>>, vector<16x1536xf32>
    %c0_3 = arith.constant 0 : index
    %c0_4 = arith.constant 0 : index
    %2 = vector.load %arg3[%c0_3, %c0_4] : memref<512x32xf32, #tpu.memory_space<vmem>>, vector<512x32xf32>
    %cst = arith.constant dense<0.000000e+00> : vector<16x1536xf32>
    %3 = tpu.matmul %0, %1, %cst {dimension_numbers = #tpu.dot_dimension_numbers<[1], [0], [0], [1], [0, 0, 1, 1], [], []>} : vector<16x16xf32>, vector<16x1536xf32>, vector<16x1536xf32> -> vector<16x1536xf32>
    %4 = tpu.iota {dimensions = array<i32: 0>} : vector<8x8xi32>
    %5 = tpu.iota {dimensions = array<i32: 1>} : vector<8x8xi32>
    %6 = arith.cmpi eq, %4, %5 : vector<8x8xi32>
    %7 = vector.extract_strided_slice %3 {offsets = [0, 0], sizes = [8, 128], strides = [1, 1]} : vector<16x1536xf32> to vector<8x128xf32>
    %8 = vector.extract_strided_slice %3 {offsets = [0, 512], sizes = [8, 128], strides = [1, 1]} : vector<16x1536xf32> to vector<8x128xf32>
    %9 = vector.extract_strided_slice %3 {offsets = [0, 1024], sizes = [8, 128], strides = [1, 1]} : vector<16x1536xf32> to vector<8x128xf32>
    %cst_5 = arith.constant dense<0.000000e+00> : vector<8x8xf32>
    %10 = tpu.matmul %7, %8, %cst_5 {dimension_numbers = #tpu.dot_dimension_numbers<[1], [1], [0], [0], [0, 0, 1, 0], [], []>} : vector<8x128xf32>, vector<8x128xf32>, vector<8x8xf32> -> vector<8x8xf32>
    %cst_6 = arith.constant 0.353553385 : f32
    %11 = vector.broadcast %cst_6 : f32 to vector<8x8xf32>
    %12 = arith.mulf %11, %10 : vector<8x8xf32>
    %cst_7 = arith.constant 0xFF800000 : f32
    %13 = vector.broadcast %cst_7 : f32 to vector<8x8xf32>
    %14 = arith.select %6, %13, %12 : vector<8x8xi1>, vector<8x8xf32>
    %cst_8 = arith.constant dense<0xFF800000> : vector<8xf32>
    %15 = vector.multi_reduction <maximumf>, %14, %cst_8 [1] : vector<8x8xf32> to vector<8xf32>
    %16 = vector.shape_cast %15 : vector<8xf32> to vector<8x1xf32>
    %17 = vector.broadcast %16 : vector<8x1xf32> to vector<8x8xf32>
    %18 = arith.subf %14, %17 : vector<8x8xf32>
    %19 = math.exp %18 : vector<8x8xf32>
    %cst_9 = arith.constant dense<0.000000e+00> : vector<8xf32>
    %20 = vector.multi_reduction <add>, %19, %cst_9 [1] : vector<8x8xf32> to vector<8xf32>
    %21 = vector.shape_cast %20 : vector<8xf32> to vector<8x1xf32>
    %22 = tpu.reciprocal %21 : vector<8x1xf32> -> vector<8x1xf32>
    %23 = vector.broadcast %22 : vector<8x1xf32> to vector<8x8xf32>
    %24 = arith.mulf %19, %23 : vector<8x8xf32>
    %cst_10 = arith.constant dense<0.000000e+00> : vector<8x128xf32>
    %25 = tpu.matmul %24, %9, %cst_10 {dimension_numbers = #tpu.dot_dimension_numbers<[1], [0], [0], [1], [0, 0, 1, 1], [], []>} : vector<8x8xf32>, vector<8x128xf32>, vector<8x128xf32> -> vector<8x128xf32>
    %26 = vector.extract_strided_slice %3 {offsets = [0, 128], sizes = [8, 128], strides = [1, 1]} : vector<16x1536xf32> to vector<8x128xf32>
    %27 = vector.extract_strided_slice %3 {offsets = [0, 640], sizes = [8, 128], strides = [1, 1]} : vector<16x1536xf32> to vector<8x128xf32>
    %28 = vector.extract_strided_slice %3 {offsets = [0, 1152], sizes = [8, 128], strides = [1, 1]} : vector<16x1536xf32> to vector<8x128xf32>
    %cst_11 = arith.constant dense<0.000000e+00> : vector<8x8xf32>
    %29 = tpu.matmul %26, %27, %cst_11 {dimension_numbers = #tpu.dot_dimension_numbers<[1], [1], [0], [0], [0, 0, 1, 0], [], []>} : vector<8x128xf32>, vector<8x128xf32>, vector<8x8xf32> -> vector<8x8xf32>
    %cst_12 = arith.constant 0.353553385 : f32
    %30 = vector.broadcast %cst_12 : f32 to vector<8x8xf32>
    %31 = arith.mulf %30, %29 : vector<8x8xf32>
    %cst_13 = arith.constant 0xFF800000 : f32
    %32 = vector.broadcast %cst_13 : f32 to vector<8x8xf32>
    %33 = arith.select %6, %32, %31 : vector<8x8xi1>, vector<8x8xf32>
    %cst_14 = arith.constant dense<0xFF800000> : vector<8xf32>
    %34 = vector.multi_reduction <maximumf>, %33, %cst_14 [1] : vector<8x8xf32> to vector<8xf32>
    %35 = vector.shape_cast %34 : vector<8xf32> to vector<8x1xf32>
    %36 = vector.broadcast %35 : vector<8x1xf32> to vector<8x8xf32>
    %37 = arith.subf %33, %36 : vector<8x8xf32>
    %38 = math.exp %37 : vector<8x8xf32>
    %cst_15 = arith.constant dense<0.000000e+00> : vector<8xf32>
    %39 = vector.multi_reduction <add>, %38, %cst_15 [1] : vector<8x8xf32> to vector<8xf32>
    %40 = vector.shape_cast %39 : vector<8xf32> to vector<8x1xf32>
    %41 = tpu.reciprocal %40 : vector<8x1xf32> -> vector<8x1xf32>
    %42 = vector.broadcast %41 : vector<8x1xf32> to vector<8x8xf32>
    %43 = arith.mulf %38, %42 : vector<8x8xf32>
    %cst_16 = arith.constant dense<0.000000e+00> : vector<8x128xf32>
    %44 = tpu.matmul %43, %28, %cst_16 {dimension_numbers = #tpu.dot_dimension_numbers<[1], [0], [0], [1], [0, 0, 1, 1], [], []>} : vector<8x8xf32>, vector<8x128xf32>, vector<8x128xf32> -> vector<8x128xf32>
    %45 = vector.extract_strided_slice %3 {offsets = [0, 256], sizes = [8, 128], strides = [1, 1]} : vector<16x1536xf32> to vector<8x128xf32>
    %46 = vector.extract_strided_slice %3 {offsets = [0, 768], sizes = [8, 128], strides = [1, 1]} : vector<16x1536xf32> to vector<8x128xf32>
    %47 = vector.extract_strided_slice %3 {offsets = [0, 1280], sizes = [8, 128], strides = [1, 1]} : vector<16x1536xf32> to vector<8x128xf32>
    %cst_17 = arith.constant dense<0.000000e+00> : vector<8x8xf32>
    %48 = tpu.matmul %45, %46, %cst_17 {dimension_numbers = #tpu.dot_dimension_numbers<[1], [1], [0], [0], [0, 0, 1, 0], [], []>} : vector<8x128xf32>, vector<8x128xf32>, vector<8x8xf32> -> vector<8x8xf32>
    %cst_18 = arith.constant 0.353553385 : f32
    %49 = vector.broadcast %cst_18 : f32 to vector<8x8xf32>
    %50 = arith.mulf %49, %48 : vector<8x8xf32>
    %cst_19 = arith.constant 0xFF800000 : f32
    %51 = vector.broadcast %cst_19 : f32 to vector<8x8xf32>
    %52 = arith.select %6, %51, %50 : vector<8x8xi1>, vector<8x8xf32>
    %cst_20 = arith.constant dense<0xFF800000> : vector<8xf32>
    %53 = vector.multi_reduction <maximumf>, %52, %cst_20 [1] : vector<8x8xf32> to vector<8xf32>
    %54 = vector.shape_cast %53 : vector<8xf32> to vector<8x1xf32>
    %55 = vector.broadcast %54 : vector<8x1xf32> to vector<8x8xf32>
    %56 = arith.subf %52, %55 : vector<8x8xf32>
    %57 = math.exp %56 : vector<8x8xf32>
    %cst_21 = arith.constant dense<0.000000e+00> : vector<8xf32>
    %58 = vector.multi_reduction <add>, %57, %cst_21 [1] : vector<8x8xf32> to vector<8xf32>
    %59 = vector.shape_cast %58 : vector<8xf32> to vector<8x1xf32>
    %60 = tpu.reciprocal %59 : vector<8x1xf32> -> vector<8x1xf32>
    %61 = vector.broadcast %60 : vector<8x1xf32> to vector<8x8xf32>
    %62 = arith.mulf %57, %61 : vector<8x8xf32>
    %cst_22 = arith.constant dense<0.000000e+00> : vector<8x128xf32>
    %63 = tpu.matmul %62, %47, %cst_22 {dimension_numbers = #tpu.dot_dimension_numbers<[1], [0], [0], [1], [0, 0, 1, 1], [], []>} : vector<8x8xf32>, vector<8x128xf32>, vector<8x128xf32> -> vector<8x128xf32>
    %64 = vector.extract_strided_slice %3 {offsets = [0, 384], sizes = [8, 128], strides = [1, 1]} : vector<16x1536xf32> to vector<8x128xf32>
    %65 = vector.extract_strided_slice %3 {offsets = [0, 896], sizes = [8, 128], strides = [1, 1]} : vector<16x1536xf32> to vector<8x128xf32>
    %66 = vector.extract_strided_slice %3 {offsets = [0, 1408], sizes = [8, 128], strides = [1, 1]} : vector<16x1536xf32> to vector<8x128xf32>
    %cst_23 = arith.constant dense<0.000000e+00> : vector<8x8xf32>
    %67 = tpu.matmul %64, %65, %cst_23 {dimension_numbers = #tpu.dot_dimension_numbers<[1], [1], [0], [0], [0, 0, 1, 0], [], []>} : vector<8x128xf32>, vector<8x128xf32>, vector<8x8xf32> -> vector<8x8xf32>
    %cst_24 = arith.constant 0.353553385 : f32
    %68 = vector.broadcast %cst_24 : f32 to vector<8x8xf32>
    %69 = arith.mulf %68, %67 : vector<8x8xf32>
    %cst_25 = arith.constant 0xFF800000 : f32
    %70 = vector.broadcast %cst_25 : f32 to vector<8x8xf32>
    %71 = arith.select %6, %70, %69 : vector<8x8xi1>, vector<8x8xf32>
    %cst_26 = arith.constant dense<0xFF800000> : vector<8xf32>
    %72 = vector.multi_reduction <maximumf>, %71, %cst_26 [1] : vector<8x8xf32> to vector<8xf32>
    %73 = vector.shape_cast %72 : vector<8xf32> to vector<8x1xf32>
    %74 = vector.broadcast %73 : vector<8x1xf32> to vector<8x8xf32>
    %75 = arith.subf %71, %74 : vector<8x8xf32>
    %76 = math.exp %75 : vector<8x8xf32>
    %cst_27 = arith.constant dense<0.000000e+00> : vector<8xf32>
    %77 = vector.multi_reduction <add>, %76, %cst_27 [1] : vector<8x8xf32> to vector<8xf32>
    %78 = vector.shape_cast %77 : vector<8xf32> to vector<8x1xf32>
    %79 = tpu.reciprocal %78 : vector<8x1xf32> -> vector<8x1xf32>
    %80 = vector.broadcast %79 : vector<8x1xf32> to vector<8x8xf32>
    %81 = arith.mulf %76, %80 : vector<8x8xf32>
    %cst_28 = arith.constant dense<0.000000e+00> : vector<8x128xf32>
    %82 = tpu.matmul %81, %66, %cst_28 {dimension_numbers = #tpu.dot_dimension_numbers<[1], [0], [0], [1], [0, 0, 1, 1], [], []>} : vector<8x8xf32>, vector<8x128xf32>, vector<8x128xf32> -> vector<8x128xf32>
    %83 = tpu.concatenate %25, %44, %63, %82 in 1 : vector<8x128xf32>, vector<8x128xf32>, vector<8x128xf32>, vector<8x128xf32> -> vector<8x512xf32>
    %84 = vector.extract_strided_slice %3 {offsets = [8, 0], sizes = [8, 128], strides = [1, 1]} : vector<16x1536xf32> to vector<8x128xf32>
    %85 = vector.extract_strided_slice %3 {offsets = [8, 512], sizes = [8, 128], strides = [1, 1]} : vector<16x1536xf32> to vector<8x128xf32>
    %86 = vector.extract_strided_slice %3 {offsets = [8, 1024], sizes = [8, 128], strides = [1, 1]} : vector<16x1536xf32> to vector<8x128xf32>
    %cst_29 = arith.constant dense<0.000000e+00> : vector<8x8xf32>
    %87 = tpu.matmul %84, %85, %cst_29 {dimension_numbers = #tpu.dot_dimension_numbers<[1], [1], [0], [0], [0, 0, 1, 0], [], []>} : vector<8x128xf32>, vector<8x128xf32>, vector<8x8xf32> -> vector<8x8xf32>
    %cst_30 = arith.constant 0.353553385 : f32
    %88 = vector.broadcast %cst_30 : f32 to vector<8x8xf32>
    %89 = arith.mulf %88, %87 : vector<8x8xf32>
    %cst_31 = arith.constant 0xFF800000 : f32
    %90 = vector.broadcast %cst_31 : f32 to vector<8x8xf32>
    %91 = arith.select %6, %90, %89 : vector<8x8xi1>, vector<8x8xf32>
    %cst_32 = arith.constant dense<0xFF800000> : vector<8xf32>
    %92 = vector.multi_reduction <maximumf>, %91, %cst_32 [1] : vector<8x8xf32> to vector<8xf32>
    %93 = vector.shape_cast %92 : vector<8xf32> to vector<8x1xf32>
    %94 = vector.broadcast %93 : vector<8x1xf32> to vector<8x8xf32>
    %95 = arith.subf %91, %94 : vector<8x8xf32>
    %96 = math.exp %95 : vector<8x8xf32>
    %cst_33 = arith.constant dense<0.000000e+00> : vector<8xf32>
    %97 = vector.multi_reduction <add>, %96, %cst_33 [1] : vector<8x8xf32> to vector<8xf32>
    %98 = vector.shape_cast %97 : vector<8xf32> to vector<8x1xf32>
    %99 = tpu.reciprocal %98 : vector<8x1xf32> -> vector<8x1xf32>
    %100 = vector.broadcast %99 : vector<8x1xf32> to vector<8x8xf32>
    %101 = arith.mulf %96, %100 : vector<8x8xf32>
    %cst_34 = arith.constant dense<0.000000e+00> : vector<8x128xf32>
    %102 = tpu.matmul %101, %86, %cst_34 {dimension_numbers = #tpu.dot_dimension_numbers<[1], [0], [0], [1], [0, 0, 1, 1], [], []>} : vector<8x8xf32>, vector<8x128xf32>, vector<8x128xf32> -> vector<8x128xf32>
    %103 = vector.extract_strided_slice %3 {offsets = [8, 128], sizes = [8, 128], strides = [1, 1]} : vector<16x1536xf32> to vector<8x128xf32>
    %104 = vector.extract_strided_slice %3 {offsets = [8, 640], sizes = [8, 128], strides = [1, 1]} : vector<16x1536xf32> to vector<8x128xf32>
    %105 = vector.extract_strided_slice %3 {offsets = [8, 1152], sizes = [8, 128], strides = [1, 1]} : vector<16x1536xf32> to vector<8x128xf32>
    %cst_35 = arith.constant dense<0.000000e+00> : vector<8x8xf32>
    %106 = tpu.matmul %103, %104, %cst_35 {dimension_numbers = #tpu.dot_dimension_numbers<[1], [1], [0], [0], [0, 0, 1, 0], [], []>} : vector<8x128xf32>, vector<8x128xf32>, vector<8x8xf32> -> vector<8x8xf32>
    %cst_36 = arith.constant 0.353553385 : f32
    %107 = vector.broadcast %cst_36 : f32 to vector<8x8xf32>
    %108 = arith.mulf %107, %106 : vector<8x8xf32>
    %cst_37 = arith.constant 0xFF800000 : f32
    %109 = vector.broadcast %cst_37 : f32 to vector<8x8xf32>
    %110 = arith.select %6, %109, %108 : vector<8x8xi1>, vector<8x8xf32>
    %cst_38 = arith.constant dense<0xFF800000> : vector<8xf32>
    %111 = vector.multi_reduction <maximumf>, %110, %cst_38 [1] : vector<8x8xf32> to vector<8xf32>
    %112 = vector.shape_cast %111 : vector<8xf32> to vector<8x1xf32>
    %113 = vector.broadcast %112 : vector<8x1xf32> to vector<8x8xf32>
    %114 = arith.subf %110, %113 : vector<8x8xf32>
    %115 = math.exp %114 : vector<8x8xf32>
    %cst_39 = arith.constant dense<0.000000e+00> : vector<8xf32>
    %116 = vector.multi_reduction <add>, %115, %cst_39 [1] : vector<8x8xf32> to vector<8xf32>
    %117 = vector.shape_cast %116 : vector<8xf32> to vector<8x1xf32>
    %118 = tpu.reciprocal %117 : vector<8x1xf32> -> vector<8x1xf32>
    %119 = vector.broadcast %118 : vector<8x1xf32> to vector<8x8xf32>
    %120 = arith.mulf %115, %119 : vector<8x8xf32>
    %cst_40 = arith.constant dense<0.000000e+00> : vector<8x128xf32>
    %121 = tpu.matmul %120, %105, %cst_40 {dimension_numbers = #tpu.dot_dimension_numbers<[1], [0], [0], [1], [0, 0, 1, 1], [], []>} : vector<8x8xf32>, vector<8x128xf32>, vector<8x128xf32> -> vector<8x128xf32>
    %122 = vector.extract_strided_slice %3 {offsets = [8, 256], sizes = [8, 128], strides = [1, 1]} : vector<16x1536xf32> to vector<8x128xf32>
    %123 = vector.extract_strided_slice %3 {offsets = [8, 768], sizes = [8, 128], strides = [1, 1]} : vector<16x1536xf32> to vector<8x128xf32>
    %124 = vector.extract_strided_slice %3 {offsets = [8, 1280], sizes = [8, 128], strides = [1, 1]} : vector<16x1536xf32> to vector<8x128xf32>
    %cst_41 = arith.constant dense<0.000000e+00> : vector<8x8xf32>
    %125 = tpu.matmul %122, %123, %cst_41 {dimension_numbers = #tpu.dot_dimension_numbers<[1], [1], [0], [0], [0, 0, 1, 0], [], []>} : vector<8x128xf32>, vector<8x128xf32>, vector<8x8xf32> -> vector<8x8xf32>
    %cst_42 = arith.constant 0.353553385 : f32
    %126 = vector.broadcast %cst_42 : f32 to vector<8x8xf32>
    %127 = arith.mulf %126, %125 : vector<8x8xf32>
    %cst_43 = arith.constant 0xFF800000 : f32
    %128 = vector.broadcast %cst_43 : f32 to vector<8x8xf32>
    %129 = arith.select %6, %128, %127 : vector<8x8xi1>, vector<8x8xf32>
    %cst_44 = arith.constant dense<0xFF800000> : vector<8xf32>
    %130 = vector.multi_reduction <maximumf>, %129, %cst_44 [1] : vector<8x8xf32> to vector<8xf32>
    %131 = vector.shape_cast %130 : vector<8xf32> to vector<8x1xf32>
    %132 = vector.broadcast %131 : vector<8x1xf32> to vector<8x8xf32>
    %133 = arith.subf %129, %132 : vector<8x8xf32>
    %134 = math.exp %133 : vector<8x8xf32>
    %cst_45 = arith.constant dense<0.000000e+00> : vector<8xf32>
    %135 = vector.multi_reduction <add>, %134, %cst_45 [1] : vector<8x8xf32> to vector<8xf32>
    %136 = vector.shape_cast %135 : vector<8xf32> to vector<8x1xf32>
    %137 = tpu.reciprocal %136 : vector<8x1xf32> -> vector<8x1xf32>
    %138 = vector.broadcast %137 : vector<8x1xf32> to vector<8x8xf32>
    %139 = arith.mulf %134, %138 : vector<8x8xf32>
    %cst_46 = arith.constant dense<0.000000e+00> : vector<8x128xf32>
    %140 = tpu.matmul %139, %124, %cst_46 {dimension_numbers = #tpu.dot_dimension_numbers<[1], [0], [0], [1], [0, 0, 1, 1], [], []>} : vector<8x8xf32>, vector<8x128xf32>, vector<8x128xf32> -> vector<8x128xf32>
    %141 = vector.extract_strided_slice %3 {offsets = [8, 384], sizes = [8, 128], strides = [1, 1]} : vector<16x1536xf32> to vector<8x128xf32>
    %142 = vector.extract_strided_slice %3 {offsets = [8, 896], sizes = [8, 128], strides = [1, 1]} : vector<16x1536xf32> to vector<8x128xf32>
    %143 = vector.extract_strided_slice %3 {offsets = [8, 1408], sizes = [8, 128], strides = [1, 1]} : vector<16x1536xf32> to vector<8x128xf32>
    %cst_47 = arith.constant dense<0.000000e+00> : vector<8x8xf32>
    %144 = tpu.matmul %141, %142, %cst_47 {dimension_numbers = #tpu.dot_dimension_numbers<[1], [1], [0], [0], [0, 0, 1, 0], [], []>} : vector<8x128xf32>, vector<8x128xf32>, vector<8x8xf32> -> vector<8x8xf32>
    %cst_48 = arith.constant 0.353553385 : f32
    %145 = vector.broadcast %cst_48 : f32 to vector<8x8xf32>
    %146 = arith.mulf %145, %144 : vector<8x8xf32>
    %cst_49 = arith.constant 0xFF800000 : f32
    %147 = vector.broadcast %cst_49 : f32 to vector<8x8xf32>
    %148 = arith.select %6, %147, %146 : vector<8x8xi1>, vector<8x8xf32>
    %cst_50 = arith.constant dense<0xFF800000> : vector<8xf32>
    %149 = vector.multi_reduction <maximumf>, %148, %cst_50 [1] : vector<8x8xf32> to vector<8xf32>
    %150 = vector.shape_cast %149 : vector<8xf32> to vector<8x1xf32>
    %151 = vector.broadcast %150 : vector<8x1xf32> to vector<8x8xf32>
    %152 = arith.subf %148, %151 : vector<8x8xf32>
    %153 = math.exp %152 : vector<8x8xf32>
    %cst_51 = arith.constant dense<0.000000e+00> : vector<8xf32>
    %154 = vector.multi_reduction <add>, %153, %cst_51 [1] : vector<8x8xf32> to vector<8xf32>
    %155 = vector.shape_cast %154 : vector<8xf32> to vector<8x1xf32>
    %156 = tpu.reciprocal %155 : vector<8x1xf32> -> vector<8x1xf32>
    %157 = vector.broadcast %156 : vector<8x1xf32> to vector<8x8xf32>
    %158 = arith.mulf %153, %157 : vector<8x8xf32>
    %cst_52 = arith.constant dense<0.000000e+00> : vector<8x128xf32>
    %159 = tpu.matmul %158, %143, %cst_52 {dimension_numbers = #tpu.dot_dimension_numbers<[1], [0], [0], [1], [0, 0, 1, 1], [], []>} : vector<8x8xf32>, vector<8x128xf32>, vector<8x128xf32> -> vector<8x128xf32>
    %160 = tpu.concatenate %102, %121, %140, %159 in 1 : vector<8x128xf32>, vector<8x128xf32>, vector<8x128xf32>, vector<8x128xf32> -> vector<8x512xf32>
    %161 = tpu.concatenate %83, %160 in 0 : vector<8x512xf32>, vector<8x512xf32> -> vector<16x512xf32>
    %cst_53 = arith.constant dense<0.000000e+00> : vector<16x32xf32>
    %162 = tpu.matmul %161, %2, %cst_53 {dimension_numbers = #tpu.dot_dimension_numbers<[1], [0], [0], [1], [0, 0, 1, 1], [], []>} : vector<16x512xf32>, vector<512x32xf32>, vector<16x32xf32> -> vector<16x32xf32>
    %c0_54 = arith.constant 0 : index
    %c0_55 = arith.constant 0 : index
    %163 = vector.load %arg4[%c0_54, %c0_55] : memref<16x32xf32, #tpu.memory_space<vmem>>, vector<16x32xf32>
    tpu.vector_store %arg4[%c0_54, %c0_55], %162 {strides = array<i32>} : memref<16x32xf32, #tpu.memory_space<vmem>>, vector<16x32xf32>,
    return
  }
  func.func @transform_0(%arg0: i32) -> (i32, i32) {
    %c0_i32 = arith.constant 0 : i32
    %c0_i32_0 = arith.constant 0 : i32
    %c0_i32_1 = arith.constant 0 : i32
    return %c0_i32, %c0_i32_0 : i32, i32
  }
  func.func @transform_1(%arg0: i32) -> (i32, i32) {
    %c0_i32 = arith.constant 0 : i32
    %c0_i32_0 = arith.constant 0 : i32
    %c0_i32_1 = arith.constant 0 : i32
    return %c0_i32, %c0_i32_0 : i32, i32
  }
  func.func @transform_2(%arg0: i32) -> (i32, i32) {
    %c0_i32 = arith.constant 0 : i32
    %c0_i32_0 = arith.constant 0 : i32
    %c0_i32_1 = arith.constant 0 : i32
    return %c0_i32, %c0_i32_0 : i32, i32
  }
  func.func @transform_3(%arg0: i32) -> (i32, i32) {
    %c0_i32 = arith.constant 0 : i32
    %c0_i32_0 = arith.constant 0 : i32
    %c0_i32_1 = arith.constant 0 : i32
    return %c0_i32, %c0_i32_0 : i32, i32
  }
}

</mosaic_0001>

<llo_original>
// kernel: tpu_custom_call.1
$region0: #{tpu_custom_call.1}
  #allocation0 [shape = 'u32[]', space=smem, size = 0x4, offset = 0x4, fixed_abs, tag = 'smem constant byte address 0x4 - core index']
  #allocation1 [shape = 'u32[72,128]{1,0:T(1,128)}', space=vmem, size = 0x9000, scoped, tag = 'internal scratch']
  %s0 = inlined_call_operand.vmem [shape: f32[16,16], index: 0, kind: input, shape index: {}]
  %s1 = inlined_call_operand.vmem [shape: f32[16,1536], index: 1, kind: input, shape index: {}]
  %s2 = inlined_call_operand.vmem [shape: f32[512,32], index: 2, kind: input, shape index: {}]
  %s3 = inlined_call_operand.hbm [shape: f32[16,32], index: 3, kind: output, shape index: {}]
  %s4 = sld [smem:[#allocation0]]
  $region22: #{tpu_custom_call.1} parent=0
    _
  %s6 = ssub.s32 1, %s4
  %s7 = scalar_select 0, %s6, %s4
  $region1: #{tpu_custom_call.1} parent=0
    #allocation2 [shape = 'u8[8192]{0}', space=vmem, size = 0x2000, scoped, tag = 'output window, operand 0, single buffered']
    #allocation3 [shape = 's32[1]{0}', space=sflag, size = 0x4, scoped, tag = 'scoped memory for tpu_custom_call.1']
    %8 = vsyncpa [#allocation3], 0
    // Predicated region
    $region2: #{tpu_custom_call.1} parent=1 // pred_check
      _
    $region3: #{tpu_custom_call.1} parent=1 // pred_check_branch
      %10 = sbr.rel (0) target = $region5
    $region4: #{tpu_custom_call.1} parent=1 // pred_region
      _
    $region5: #{tpu_custom_call.1} parent=1 // pred_fallthru
      _
    // Predicated region
    $region6: #{tpu_custom_call.1} parent=1 // pred_check
      _
    $region7: #{tpu_custom_call.1} parent=1 // pred_check_branch
      %12 = sbr.rel (0) target = $region9
    $region8: #{tpu_custom_call.1} parent=1 // pred_region
      _
    $region9: #{tpu_custom_call.1} parent=1 // pred_fallthru
      _
    // Predicated region
    $region10: #{tpu_custom_call.1} parent=1 // pred_check
      _
    $region11: #{tpu_custom_call.1} parent=1 // pred_check_branch
      %14 = sbr.rel (0) target = $region13
    $region12: #{tpu_custom_call.1} parent=1 // pred_region
      _
    $region13: #{tpu_custom_call.1} parent=1 // pred_fallthru
      _
    %v15 = vld [vmem:[%s0] sm:$0xff]
    %v16 = vld [vmem:[%s0 + $0x8] sm:$0xff]
    %v17 = vld [vmem:[%s1] sm:$0xff]
    %v18 = vld [vmem:[%s1 + $0x8] sm:$0xff]
    %v19 = vld [vmem:[%s1 + $0x10] sm:$0xff]
    %v20 = vld [vmem:[%s1 + $0x18] sm:$0xff]
    %v21 = vld [vmem:[%s1 + $0x20] sm:$0xff]
    %v22 = vld [vmem:[%s1 + $0x28] sm:$0xff]
    %v23 = vld [vmem:[%s1 + $0x30] sm:$0xff]
    %v24 = vld [vmem:[%s1 + $0x38] sm:$0xff]
    %v25 = vld [vmem:[%s1 + $0x40] sm:$0xff]
    %v26 = vld [vmem:[%s1 + $0x48] sm:$0xff]
    %v27 = vld [vmem:[%s1 + $0x50] sm:$0xff]
    %v28 = vld [vmem:[%s1 + $0x58] sm:$0xff]
    %v29 = vld [vmem:[%s1 + $0x60] sm:$0xff]
    %v30 = vld [vmem:[%s1 + $0x68] sm:$0xff]
    %v31 = vld [vmem:[%s1 + $0x70] sm:$0xff]
    %v32 = vld [vmem:[%s1 + $0x78] sm:$0xff]
    %v33 = vld [vmem:[%s1 + $0x80] sm:$0xff]
    %v34 = vld [vmem:[%s1 + $0x88] sm:$0xff]
    %v35 = vld [vmem:[%s1 + $0x90] sm:$0xff]
    %v36 = vld [vmem:[%s1 + $0x98] sm:$0xff]
    %v37 = vld [vmem:[%s1 + $0xa0] sm:$0xff]
    %v38 = vld [vmem:[%s1 + $0xa8] sm:$0xff]
    %v39 = vld [vmem:[%s1 + $0xb0] sm:$0xff]
    %v40 = vld [vmem:[%s1 + $0xb8] sm:$0xff]
    %v41 = vld [vmem:[%s2] sm:$0xff]
    %v42 = vld [vmem:[%s2 + $0x8] sm:$0xff]
    %v43 = vld [vmem:[%s2 + $0x10] sm:$0xff]
    %v44 = vld [vmem:[%s2 + $0x18] sm:$0xff]
    %v45 = vld [vmem:[%s2 + $0x20] sm:$0xff]
    %v46 = vld [vmem:[%s2 + $0x28] sm:$0xff]
    %v47 = vld [vmem:[%s2 + $0x30] sm:$0xff]
    %v48 = vld [vmem:[%s2 + $0x38] sm:$0xff]
    %v49 = vld [vmem:[%s2 + $0x40] sm:$0xff]
    %v50 = vld [vmem:[%s2 + $0x48] sm:$0xff]
    %v51 = vld [vmem:[%s2 + $0x50] sm:$0xff]
    %v52 = vld [vmem:[%s2 + $0x58] sm:$0xff]
    %v53 = vld [vmem:[%s2 + $0x60] sm:$0xff]
    %v54 = vld [vmem:[%s2 + $0x68] sm:$0xff]
    %v55 = vld [vmem:[%s2 + $0x70] sm:$0xff]
    %v56 = vld [vmem:[%s2 + $0x78] sm:$0xff]
    %v57 = vld [vmem:[%s2 + $0x80] sm:$0xff]
    %v58 = vld [vmem:[%s2 + $0x88] sm:$0xff]
    %v59 = vld [vmem:[%s2 + $0x90] sm:$0xff]
    %v60 = vld [vmem:[%s2 + $0x98] sm:$0xff]
    %v61 = vld [vmem:[%s2 + $0xa0] sm:$0xff]
    %v62 = vld [vmem:[%s2 + $0xa8] sm:$0xff]
    %v63 = vld [vmem:[%s2 + $0xb0] sm:$0xff]
    %v64 = vld [vmem:[%s2 + $0xb8] sm:$0xff]
    %v65 = vld [vmem:[%s2 + $0xc0] sm:$0xff]
    %v66 = vld [vmem:[%s2 + $0xc8] sm:$0xff]
    %v67 = vld [vmem:[%s2 + $0xd0] sm:$0xff]
    %v68 = vld [vmem:[%s2 + $0xd8] sm:$0xff]
    %v69 = vld [vmem:[%s2 + $0xe0] sm:$0xff]
    %v70 = vld [vmem:[%s2 + $0xe8] sm:$0xff]
    %v71 = vld [vmem:[%s2 + $0xf0] sm:$0xff]
    %v72 = vld [vmem:[%s2 + $0xf8] sm:$0xff]
    %v73 = vld [vmem:[%s2 + $0x100] sm:$0xff]
    %v74 = vld [vmem:[%s2 + $0x108] sm:$0xff]
    %v75 = vld [vmem:[%s2 + $0x110] sm:$0xff]
    %v76 = vld [vmem:[%s2 + $0x118] sm:$0xff]
    %v77 = vld [vmem:[%s2 + $0x120] sm:$0xff]
    %v78 = vld [vmem:[%s2 + $0x128] sm:$0xff]
    %v79 = vld [vmem:[%s2 + $0x130] sm:$0xff]
    %v80 = vld [vmem:[%s2 + $0x138] sm:$0xff]
    %v81 = vld [vmem:[%s2 + $0x140] sm:$0xff]
    %v82 = vld [vmem:[%s2 + $0x148] sm:$0xff]
    %v83 = vld [vmem:[%s2 + $0x150] sm:$0xff]
    %v84 = vld [vmem:[%s2 + $0x158] sm:$0xff]
    %v85 = vld [vmem:[%s2 + $0x160] sm:$0xff]
    %v86 = vld [vmem:[%s2 + $0x168] sm:$0xff]
    %v87 = vld [vmem:[%s2 + $0x170] sm:$0xff]
    %v88 = vld [vmem:[%s2 + $0x178] sm:$0xff]
    %v89 = vld [vmem:[%s2 + $0x180] sm:$0xff]
    %v90 = vld [vmem:[%s2 + $0x188] sm:$0xff]
    %v91 = vld [vmem:[%s2 + $0x190] sm:$0xff]
    %v92 = vld [vmem:[%s2 + $0x198] sm:$0xff]
    %v93 = vld [vmem:[%s2 + $0x1a0] sm:$0xff]
    %v94 = vld [vmem:[%s2 + $0x1a8] sm:$0xff]
    %v95 = vld [vmem:[%s2 + $0x1b0] sm:$0xff]
    %v96 = vld [vmem:[%s2 + $0x1b8] sm:$0xff]
    %v97 = vld [vmem:[%s2 + $0x1c0] sm:$0xff]
    %v98 = vld [vmem:[%s2 + $0x1c8] sm:$0xff]
    %v99 = vld [vmem:[%s2 + $0x1d0] sm:$0xff]
    %v100 = vld [vmem:[%s2 + $0x1d8] sm:$0xff]
    %v101 = vld [vmem:[%s2 + $0x1e0] sm:$0xff]
    %v102 = vld [vmem:[%s2 + $0x1e8] sm:$0xff]
    %v103 = vld [vmem:[%s2 + $0x1f0] sm:$0xff]
    %v104 = vld [vmem:[%s2 + $0x1f8] sm:$0xff]
    %vm105 = vcmask 130048
    %v107 = vsel %vm105, %v15, 0
    %v110 = vsel %vm105, %v16, 0
    %112 = vmatpush.msra.mxu0 0.0
    %113 = vmatpush.msra.mxu0 0.0
    %114 = vmatpush.msra.mxu0 0.0
    %115 = vmatpush.msra.mxu0 0.0
    %116 = vmatpush.msra.mxu0 0.0
    %117 = vmatpush.msra.mxu0 0.0
    %118 = vmatpush.msra.mxu0 0.0
    %119 = vmatpush.msra.mxu0 0.0
    %120 = vmatpush.msra.mxu0 0.0
    %121 = vmatpush.msra.mxu0 0.0
    %122 = vmatpush.msra.mxu0 0.0
    %123 = vmatpush.msra.mxu0 0.0
    %124 = vmatpush.msra.mxu0 0.0
    %125 = vmatpush.msra.mxu0 0.0
    %126 = vmatpush.msra.mxu0 %v29
    %127 = vmatpush.msra.mxu0 %v17
    %128 = vmatmul.f32.gmra.mxu0 %v107
    %v129 = vpop.f32.mrf.mxu0
    %v130 = vadd.f32 0.0, %v129
    %131 = vmatmul.f32.gmra.mxu0 %v110
    %v132 = vpop.f32.mrf.mxu0
    %v133 = vadd.f32 0.0, %v132
    %134 = vdwg.mxu0
    %135 = vmatpush.msra.mxu0 0.0
    %136 = vmatpush.msra.mxu0 0.0
    %137 = vmatpush.msra.mxu0 0.0
    %138 = vmatpush.msra.mxu0 0.0
    %139 = vmatpush.msra.mxu0 0.0
    %140 = vmatpush.msra.mxu0 0.0
    %141 = vmatpush.msra.mxu0 0.0
    %142 = vmatpush.msra.mxu0 0.0
    %143 = vmatpush.msra.mxu0 0.0
    %144 = vmatpush.msra.mxu0 0.0
    %145 = vmatpush.msra.mxu0 0.0
    %146 = vmatpush.msra.mxu0 0.0
    %147 = vmatpush.msra.mxu0 0.0
    %148 = vmatpush.msra.mxu0 0.0
    %149 = vmatpush.msra.mxu0 %v30
    %150 = vmatpush.msra.mxu0 %v18
    %151 = vmatmul.f32.gmra.mxu0 %v107
    %v152 = vpop.f32.mrf.mxu0
    %v153 = vadd.f32 0.0, %v152
    %154 = vmatmul.f32.gmra.mxu0 %v110
    %v155 = vpop.f32.mrf.mxu0
    %v156 = vadd.f32 0.0, %v155
    %157 = vdwg.mxu0
    %158 = vmatpush.msra.mxu0 0.0
    %159 = vmatpush.msra.mxu0 0.0
    %160 = vmatpush.msra.mxu0 0.0
    %161 = vmatpush.msra.mxu0 0.0
    %162 = vmatpush.msra.mxu0 0.0
    %163 = vmatpush.msra.mxu0 0.0
    %164 = vmatpush.msra.mxu0 0.0
    %165 = vmatpush.msra.mxu0 0.0
    %166 = vmatpush.msra.mxu0 0.0
    %167 = vmatpush.msra.mxu0 0.0
    %168 = vmatpush.msra.mxu0 0.0
    %169 = vmatpush.msra.mxu0 0.0
    %170 = vmatpush.msra.mxu0 0.0
    %171 = vmatpush.msra.mxu0 0.0
    %172 = vmatpush.msra.mxu0 %v31
    %173 = vmatpush.msra.mxu0 %v19
    %174 = vmatmul.f32.gmra.mxu0 %v107
    %v175 = vpop.f32.mrf.mxu0
    %v176 = vadd.f32 0.0, %v175
    %177 = vmatmul.f32.gmra.mxu0 %v110
    %v178 = vpop.f32.mrf.mxu0
    %v179 = vadd.f32 0.0, %v178
    %180 = vdwg.mxu0
    %181 = vmatpush.msra.mxu0 0.0
    %182 = vmatpush.msra.mxu0 0.0
    %183 = vmatpush.msra.mxu0 0.0
    %184 = vmatpush.msra.mxu0 0.0
    %185 = vmatpush.msra.mxu0 0.0
    %186 = vmatpush.msra.mxu0 0.0
    %187 = vmatpush.msra.mxu0 0.0
    %188 = vmatpush.msra.mxu0 0.0
    %189 = vmatpush.msra.mxu0 0.0
    %190 = vmatpush.msra.mxu0 0.0
    %191 = vmatpush.msra.mxu0 0.0
    %192 = vmatpush.msra.mxu0 0.0
    %193 = vmatpush.msra.mxu0 0.0
    %194 = vmatpush.msra.mxu0 0.0
    %195 = vmatpush.msra.mxu0 %v32
    %196 = vmatpush.msra.mxu0 %v20
    %197 = vmatmul.f32.gmra.mxu0 %v107
    %v198 = vpop.f32.mrf.mxu0
    %v199 = vadd.f32 0.0, %v198
    %200 = vmatmul.f32.gmra.mxu0 %v110
    %v201 = vpop.f32.mrf.mxu0
    %v202 = vadd.f32 0.0, %v201
    %203 = vdwg.mxu0
    %204 = vmatpush.msra.mxu0 0.0
    %205 = vmatpush.msra.mxu0 0.0
    %206 = vmatpush.msra.mxu0 0.0
    %207 = vmatpush.msra.mxu0 0.0
    %208 = vmatpush.msra.mxu0 0.0
    %209 = vmatpush.msra.mxu0 0.0
    %210 = vmatpush.msra.mxu0 0.0
    %211 = vmatpush.msra.mxu0 0.0
    %212 = vmatpush.msra.mxu0 0.0
    %213 = vmatpush.msra.mxu0 0.0
    %214 = vmatpush.msra.mxu0 0.0
    %215 = vmatpush.msra.mxu0 0.0
    %216 = vmatpush.msra.mxu0 0.0
    %217 = vmatpush.msra.mxu0 0.0
    %218 = vmatpush.msra.mxu0 %v33
    %219 = vmatpush.msra.mxu0 %v21
    %220 = vmatmul.f32.gmra.mxu0 %v107
    %v221 = vpop.f32.mrf.mxu0
    %v222 = vadd.f32 0.0, %v221
    %223 = vmatmul.f32.gmra.mxu0 %v110
    %v224 = vpop.f32.mrf.mxu0
    %v225 = vadd.f32 0.0, %v224
    %226 = vdwg.mxu0
    %227 = vmatpush.msra.mxu0 0.0
    %228 = vmatpush.msra.mxu0 0.0
    %229 = vmatpush.msra.mxu0 0.0
    %230 = vmatpush.msra.mxu0 0.0
    %231 = vmatpush.msra.mxu0 0.0
    %232 = vmatpush.msra.mxu0 0.0
    %233 = vmatpush.msra.mxu0 0.0
    %234 = vmatpush.msra.mxu0 0.0
    %235 = vmatpush.msra.mxu0 0.0
    %236 = vmatpush.msra.mxu0 0.0
    %237 = vmatpush.msra.mxu0 0.0
    %238 = vmatpush.msra.mxu0 0.0
    %239 = vmatpush.msra.mxu0 0.0
    %240 = vmatpush.msra.mxu0 0.0
    %241 = vmatpush.msra.mxu0 %v34
    %242 = vmatpush.msra.mxu0 %v22
    %243 = vmatmul.f32.gmra.mxu0 %v107
    %v244 = vpop.f32.mrf.mxu0
    %v245 = vadd.f32 0.0, %v244
    %246 = vmatmul.f32.gmra.mxu0 %v110
    %v247 = vpop.f32.mrf.mxu0
    %v248 = vadd.f32 0.0, %v247
    %249 = vdwg.mxu0
    %250 = vmatpush.msra.mxu0 0.0
    %251 = vmatpush.msra.mxu0 0.0
    %252 = vmatpush.msra.mxu0 0.0
    %253 = vmatpush.msra.mxu0 0.0
    %254 = vmatpush.msra.mxu0 0.0
    %255 = vmatpush.msra.mxu0 0.0
    %256 = vmatpush.msra.mxu0 0.0
    %257 = vmatpush.msra.mxu0 0.0
    %258 = vmatpush.msra.mxu0 0.0
    %259 = vmatpush.msra.mxu0 0.0
    %260 = vmatpush.msra.mxu0 0.0
    %261 = vmatpush.msra.mxu0 0.0
    %262 = vmatpush.msra.mxu0 0.0
    %263 = vmatpush.msra.mxu0 0.0
    %264 = vmatpush.msra.mxu0 %v35
    %265 = vmatpush.msra.mxu0 %v23
    %266 = vmatmul.f32.gmra.mxu0 %v107
    %v267 = vpop.f32.mrf.mxu0
    %v268 = vadd.f32 0.0, %v267
    %269 = vmatmul.f32.gmra.mxu0 %v110
    %v270 = vpop.f32.mrf.mxu0
    %v271 = vadd.f32 0.0, %v270
    %272 = vdwg.mxu0
    %273 = vmatpush.msra.mxu0 0.0
    %274 = vmatpush.msra.mxu0 0.0
    %275 = vmatpush.msra.mxu0 0.0
    %276 = vmatpush.msra.mxu0 0.0
    %277 = vmatpush.msra.mxu0 0.0
    %278 = vmatpush.msra.mxu0 0.0
    %279 = vmatpush.msra.mxu0 0.0
    %280 = vmatpush.msra.mxu0 0.0
    %281 = vmatpush.msra.mxu0 0.0
    %282 = vmatpush.msra.mxu0 0.0
    %283 = vmatpush.msra.mxu0 0.0
    %284 = vmatpush.msra.mxu0 0.0
    %285 = vmatpush.msra.mxu0 0.0
    %286 = vmatpush.msra.mxu0 0.0
    %287 = vmatpush.msra.mxu0 %v36
    %288 = vmatpush.msra.mxu0 %v24
    %289 = vmatmul.f32.gmra.mxu0 %v107
    %v290 = vpop.f32.mrf.mxu0
    %v291 = vadd.f32 0.0, %v290
    %292 = vmatmul.f32.gmra.mxu0 %v110
    %v293 = vpop.f32.mrf.mxu0
    %v294 = vadd.f32 0.0, %v293
    %295 = vdwg.mxu0
    %296 = vmatpush.msra.mxu0 0.0
    %297 = vmatpush.msra.mxu0 0.0
    %298 = vmatpush.msra.mxu0 0.0
    %299 = vmatpush.msra.mxu0 0.0
    %300 = vmatpush.msra.mxu0 0.0
    %301 = vmatpush.msra.mxu0 0.0
    %302 = vmatpush.msra.mxu0 0.0
    %303 = vmatpush.msra.mxu0 0.0
    %304 = vmatpush.msra.mxu0 0.0
    %305 = vmatpush.msra.mxu0 0.0
    %306 = vmatpush.msra.mxu0 0.0
    %307 = vmatpush.msra.mxu0 0.0
    %308 = vmatpush.msra.mxu0 0.0
    %309 = vmatpush.msra.mxu0 0.0
    %310 = vmatpush.msra.mxu0 %v37
    %311 = vmatpush.msra.mxu0 %v25
    %312 = vmatmul.f32.gmra.mxu0 %v107
    %v313 = vpop.f32.mrf.mxu0
    %v314 = vadd.f32 0.0, %v313
    %315 = vmatmul.f32.gmra.mxu0 %v110
    %v316 = vpop.f32.mrf.mxu0
    %v317 = vadd.f32 0.0, %v316
    %318 = vdwg.mxu0
    %319 = vmatpush.msra.mxu0 0.0
    %320 = vmatpush.msra.mxu0 0.0
    %321 = vmatpush.msra.mxu0 0.0
    %322 = vmatpush.msra.mxu0 0.0
    %323 = vmatpush.msra.mxu0 0.0
    %324 = vmatpush.msra.mxu0 0.0
    %325 = vmatpush.msra.mxu0 0.0
    %326 = vmatpush.msra.mxu0 0.0
    %327 = vmatpush.msra.mxu0 0.0
    %328 = vmatpush.msra.mxu0 0.0
    %329 = vmatpush.msra.mxu0 0.0
    %330 = vmatpush.msra.mxu0 0.0
    %331 = vmatpush.msra.mxu0 0.0
    %332 = vmatpush.msra.mxu0 0.0
    %333 = vmatpush.msra.mxu0 %v38
    %334 = vmatpush.msra.mxu0 %v26
    %335 = vmatmul.f32.gmra.mxu0 %v107
    %v336 = vpop.f32.mrf.mxu0
    %v337 = vadd.f32 0.0, %v336
    %338 = vmatmul.f32.gmra.mxu0 %v110
    %v339 = vpop.f32.mrf.mxu0
    %v340 = vadd.f32 0.0, %v339
    %341 = vdwg.mxu0
    %342 = vmatpush.msra.mxu0 0.0
    %343 = vmatpush.msra.mxu0 0.0
    %344 = vmatpush.msra.mxu0 0.0
    %345 = vmatpush.msra.mxu0 0.0
    %346 = vmatpush.msra.mxu0 0.0
    %347 = vmatpush.msra.mxu0 0.0
    %348 = vmatpush.msra.mxu0 0.0
    %349 = vmatpush.msra.mxu0 0.0
    %350 = vmatpush.msra.mxu0 0.0
    %351 = vmatpush.msra.mxu0 0.0
    %352 = vmatpush.msra.mxu0 0.0
    %353 = vmatpush.msra.mxu0 0.0
    %354 = vmatpush.msra.mxu0 0.0
    %355 = vmatpush.msra.mxu0 0.0
    %356 = vmatpush.msra.mxu0 %v39
    %357 = vmatpush.msra.mxu0 %v27
    %358 = vmatmul.f32.gmra.mxu0 %v107
    %v359 = vpop.f32.mrf.mxu0
    %v360 = vadd.f32 0.0, %v359
    %361 = vmatmul.f32.gmra.mxu0 %v110
    %v362 = vpop.f32.mrf.mxu0
    %v363 = vadd.f32 0.0, %v362
    %364 = vdwg.mxu0
    %365 = vmatpush.msra.mxu0 0.0
    %366 = vmatpush.msra.mxu0 0.0
    %367 = vmatpush.msra.mxu0 0.0
    %368 = vmatpush.msra.mxu0 0.0
    %369 = vmatpush.msra.mxu0 0.0
    %370 = vmatpush.msra.mxu0 0.0
    %371 = vmatpush.msra.mxu0 0.0
    %372 = vmatpush.msra.mxu0 0.0
    %373 = vmatpush.msra.mxu0 0.0
    %374 = vmatpush.msra.mxu0 0.0
    %375 = vmatpush.msra.mxu0 0.0
    %376 = vmatpush.msra.mxu0 0.0
    %377 = vmatpush.msra.mxu0 0.0
    %378 = vmatpush.msra.mxu0 0.0
    %379 = vmatpush.msra.mxu0 %v40
    %380 = vmatpush.msra.mxu0 %v28
    %381 = vmatmul.f32.gmra.mxu0 %v107
    %v382 = vpop.f32.mrf.mxu0
    %v383 = vadd.f32 0.0, %v382
    %384 = vmatmul.f32.gmra.mxu0 %v110
    %v385 = vpop.f32.mrf.mxu0
    %v386 = vadd.f32 0.0, %v385
    %387 = vdwg.mxu0
    %v388 = vlaneseq
    %v389 = vshrl.u32 %v388, 7
    %v390 = vlaneseq
    %v391 = vand.u32 %v390, 127
    %vm392 = vcmp.eq.s32.totalorder %v389, %v391
    %393 = vmatpush.xpose.msra.mxu0 0.0
    %394 = vmatpush.xpose.msra.mxu0 0.0
    %395 = vmatpush.xpose.msra.mxu0 0.0
    %396 = vmatpush.xpose.msra.mxu0 0.0
    %397 = vmatpush.xpose.msra.mxu0 0.0
    %398 = vmatpush.xpose.msra.mxu0 0.0
    %399 = vmatpush.xpose.msra.mxu0 0.0
    %400 = vmatpush.xpose.msra.mxu0 0.0
    %401 = vmatpush.xpose.msra.mxu0 0.0
    %402 = vmatpush.xpose.msra.mxu0 0.0
    %403 = vmatpush.xpose.msra.mxu0 0.0
    %404 = vmatpush.xpose.msra.mxu0 0.0
    %405 = vmatpush.xpose.msra.mxu0 0.0
    %406 = vmatpush.xpose.msra.mxu0 0.0
    %407 = vmatpush.xpose.msra.mxu0 0.0
    %408 = vmatpush.xpose.msra.mxu0 %v222
    %409 = vmatmul.f32.gmra.mxu0 %v130
    %v410 = vpop.f32.mrf.mxu0
    %v411 = vadd.f32 0.0, %v410
    %412 = vdwg.mxu0
    %v413 = vmul.f32 %v411, 0.35355338
    %v414 = vsel %vm392, -inf, %v413
    %vm415 = vcmask 64512
    %v416 = vsel %vm415, %v414, -inf
    %417 = vmax.xlane.f32.xlu0 %v416
    %v418 = vpop.xlane.xlu0 %417
    %v419 = vsub.f32 %v414, %v418
    %v420 = vmul.f32 %v419, 1.442695
    %v421 = vpow.pop %v420
    %v422 = vsel %vm415, %v421, 0.0
    %423 = vadd.xlane.f32.xlu0 %v422
    %v424 = vpop.xlane.xlu0 %423
    %v425 = vrcp.pop %v424
    %v426 = vmul.f32 %v424, %v425
    %v427 = vsub.f32 1.0, %v426
    %v428 = vmul.f32 %v425, %v427
    %v429 = vadd.f32 %v425, %v428
    %vm430 = vweird.f32 %v424
    %vm431 = vweird.f32 %v425
    %vm432 = vmor %vm430, %vm431
    %v433 = vsel %vm432, %v425, %v429
    %v434 = vand.u32 2147483647, %v424
    %vm435 = vcmp.eq.f32.partialorder %v434, 8.507059e+37
    %v436 = vand.u32 %v424, 2147483648
    %v437 = vor.u32 1.1754944e-38, %v436
    %v438 = vsel %vm435, %v437, %v433
    %v439 = vmul.f32 %v421, %v438
    %v441 = vsel %vm415, %v439, 0
    %443 = vmatpush.msra.mxu0 0.0
    %444 = vmatpush.msra.mxu0 0.0
    %445 = vmatpush.msra.mxu0 0.0
    %446 = vmatpush.msra.mxu0 0.0
    %447 = vmatpush.msra.mxu0 0.0
    %448 = vmatpush.msra.mxu0 0.0
    %449 = vmatpush.msra.mxu0 0.0
    %450 = vmatpush.msra.mxu0 0.0
    %451 = vmatpush.msra.mxu0 0.0
    %452 = vmatpush.msra.mxu0 0.0
    %453 = vmatpush.msra.mxu0 0.0
    %454 = vmatpush.msra.mxu0 0.0
    %455 = vmatpush.msra.mxu0 0.0
    %456 = vmatpush.msra.mxu0 0.0
    %457 = vmatpush.msra.mxu0 0.0
    %458 = vmatpush.msra.mxu0 %v314
    %459 = vmatmul.f32.gmra.mxu0 %v441
    %v460 = vpop.f32.mrf.mxu0
    %v461 = vadd.f32 0.0, %v460
    %462 = vdwg.mxu0
    %463 = vmatpush.xpose.msra.mxu0 0.0
    %464 = vmatpush.xpose.msra.mxu0 0.0
    %465 = vmatpush.xpose.msra.mxu0 0.0
    %466 = vmatpush.xpose.msra.mxu0 0.0
    %467 = vmatpush.xpose.msra.mxu0 0.0
    %468 = vmatpush.xpose.msra.mxu0 0.0
    %469 = vmatpush.xpose.msra.mxu0 0.0
    %470 = vmatpush.xpose.msra.mxu0 0.0
    %471 = vmatpush.xpose.msra.mxu0 0.0
    %472 = vmatpush.xpose.msra.mxu0 0.0
    %473 = vmatpush.xpose.msra.mxu0 0.0
    %474 = vmatpush.xpose.msra.mxu0 0.0
    %475 = vmatpush.xpose.msra.mxu0 0.0
    %476 = vmatpush.xpose.msra.mxu0 0.0
    %477 = vmatpush.xpose.msra.mxu0 0.0
    %478 = vmatpush.xpose.msra.mxu0 %v245
    %479 = vmatmul.f32.gmra.mxu0 %v153
    %v480 = vpop.f32.mrf.mxu0
    %v481 = vadd.f32 0.0, %v480
    %482 = vdwg.mxu0
    %v483 = vmul.f32 %v481, 0.35355338
    %v484 = vsel %vm392, -inf, %v483
    %v485 = vsel %vm415, %v484, -inf
    %486 = vmax.xlane.f32.xlu0 %v485
    %v487 = vpop.xlane.xlu0 %486
    %v488 = vsub.f32 %v484, %v487
    %v489 = vmul.f32 %v488, 1.442695
    %v490 = vpow.pop %v489
    %v491 = vsel %vm415, %v490, 0.0
    %492 = vadd.xlane.f32.xlu0 %v491
    %v493 = vpop.xlane.xlu0 %492
    %v494 = vrcp.pop %v493
    %v495 = vmul.f32 %v493, %v494
    %v496 = vsub.f32 1.0, %v495
    %v497 = vmul.f32 %v494, %v496
    %v498 = vadd.f32 %v494, %v497
    %vm499 = vweird.f32 %v493
    %vm500 = vweird.f32 %v494
    %vm501 = vmor %vm499, %vm500
    %v502 = vsel %vm501, %v494, %v498
    %v503 = vand.u32 2147483647, %v493
    %vm504 = vcmp.eq.f32.partialorder %v503, 8.507059e+37
    %v505 = vand.u32 %v493, 2147483648
    %v506 = vor.u32 1.1754944e-38, %v505
    %v507 = vsel %vm504, %v506, %v502
    %v508 = vmul.f32 %v490, %v507
    %v510 = vsel %vm415, %v508, 0
    %512 = vmatpush.msra.mxu0 0.0
    %513 = vmatpush.msra.mxu0 0.0
    %514 = vmatpush.msra.mxu0 0.0
    %515 = vmatpush.msra.mxu0 0.0
    %516 = vmatpush.msra.mxu0 0.0
    %517 = vmatpush.msra.mxu0 0.0
    %518 = vmatpush.msra.mxu0 0.0
    %519 = vmatpush.msra.mxu0 0.0
    %520 = vmatpush.msra.mxu0 0.0
    %521 = vmatpush.msra.mxu0 0.0
    %522 = vmatpush.msra.mxu0 0.0
    %523 = vmatpush.msra.mxu0 0.0
    %524 = vmatpush.msra.mxu0 0.0
    %525 = vmatpush.msra.mxu0 0.0
    %526 = vmatpush.msra.mxu0 0.0
    %527 = vmatpush.msra.mxu0 %v337
    %528 = vmatmul.f32.gmra.mxu0 %v510
    %v529 = vpop.f32.mrf.mxu0
    %v530 = vadd.f32 0.0, %v529
    %531 = vdwg.mxu0
    %532 = vmatpush.xpose.msra.mxu0 0.0
    %533 = vmatpush.xpose.msra.mxu0 0.0
    %534 = vmatpush.xpose.msra.mxu0 0.0
    %535 = vmatpush.xpose.msra.mxu0 0.0
    %536 = vmatpush.xpose.msra.mxu0 0.0
    %537 = vmatpush.xpose.msra.mxu0 0.0
    %538 = vmatpush.xpose.msra.mxu0 0.0
    %539 = vmatpush.xpose.msra.mxu0 0.0
    %540 = vmatpush.xpose.msra.mxu0 0.0
    %541 = vmatpush.xpose.msra.mxu0 0.0
    %542 = vmatpush.xpose.msra.mxu0 0.0
    %543 = vmatpush.xpose.msra.mxu0 0.0
    %544 = vmatpush.xpose.msra.mxu0 0.0
    %545 = vmatpush.xpose.msra.mxu0 0.0
    %546 = vmatpush.xpose.msra.mxu0 0.0
    %547 = vmatpush.xpose.msra.mxu0 %v268
    %548 = vmatmul.f32.gmra.mxu0 %v176
    %v549 = vpop.f32.mrf.mxu0
    %v550 = vadd.f32 0.0, %v549
    %551 = vdwg.mxu0
    %v552 = vmul.f32 %v550, 0.35355338
    %v553 = vsel %vm392, -inf, %v552
    %v554 = vsel %vm415, %v553, -inf
    %555 = vmax.xlane.f32.xlu0 %v554
    %v556 = vpop.xlane.xlu0 %555
    %v557 = vsub.f32 %v553, %v556
    %v558 = vmul.f32 %v557, 1.442695
    %v559 = vpow.pop %v558
    %v560 = vsel %vm415, %v559, 0.0
    %561 = vadd.xlane.f32.xlu0 %v560
    %v562 = vpop.xlane.xlu0 %561
    %v563 = vrcp.pop %v562
    %v564 = vmul.f32 %v562, %v563
    %v565 = vsub.f32 1.0, %v564
    %v566 = vmul.f32 %v563, %v565
    %v567 = vadd.f32 %v563, %v566
    %vm568 = vweird.f32 %v562
    %vm569 = vweird.f32 %v563
    %vm570 = vmor %vm568, %vm569
    %v571 = vsel %vm570, %v563, %v567
    %v572 = vand.u32 2147483647, %v562
    %vm573 = vcmp.eq.f32.partialorder %v572, 8.507059e+37
    %v574 = vand.u32 %v562, 2147483648
    %v575 = vor.u32 1.1754944e-38, %v574
    %v576 = vsel %vm573, %v575, %v571
    %v577 = vmul.f32 %v559, %v576
    %v579 = vsel %vm415, %v577, 0
    %581 = vmatpush.msra.mxu0 0.0
    %582 = vmatpush.msra.mxu0 0.0
    %583 = vmatpush.msra.mxu0 0.0
    %584 = vmatpush.msra.mxu0 0.0
    %585 = vmatpush.msra.mxu0 0.0
    %586 = vmatpush.msra.mxu0 0.0
    %587 = vmatpush.msra.mxu0 0.0
    %588 = vmatpush.msra.mxu0 0.0
    %589 = vmatpush.msra.mxu0 0.0
    %590 = vmatpush.msra.mxu0 0.0
    %591 = vmatpush.msra.mxu0 0.0
    %592 = vmatpush.msra.mxu0 0.0
    %593 = vmatpush.msra.mxu0 0.0
    %594 = vmatpush.msra.mxu0 0.0
    %595 = vmatpush.msra.mxu0 0.0
    %596 = vmatpush.msra.mxu0 %v360
    %597 = vmatmul.f32.gmra.mxu0 %v579
    %v598 = vpop.f32.mrf.mxu0
    %v599 = vadd.f32 0.0, %v598
    %600 = vdwg.mxu0
    %601 = vmatpush.xpose.msra.mxu0 0.0
    %602 = vmatpush.xpose.msra.mxu0 0.0
    %603 = vmatpush.xpose.msra.mxu0 0.0
    %604 = vmatpush.xpose.msra.mxu0 0.0
    %605 = vmatpush.xpose.msra.mxu0 0.0
    %606 = vmatpush.xpose.msra.mxu0 0.0
    %607 = vmatpush.xpose.msra.mxu0 0.0
    %608 = vmatpush.xpose.msra.mxu0 0.0
    %609 = vmatpush.xpose.msra.mxu0 0.0
    %610 = vmatpush.xpose.msra.mxu0 0.0
    %611 = vmatpush.xpose.msra.mxu0 0.0
    %612 = vmatpush.xpose.msra.mxu0 0.0
    %613 = vmatpush.xpose.msra.mxu0 0.0
    %614 = vmatpush.xpose.msra.mxu0 0.0
    %615 = vmatpush.xpose.msra.mxu0 0.0
    %616 = vmatpush.xpose.msra.mxu0 %v291
    %617 = vmatmul.f32.gmra.mxu0 %v199
    %v618 = vpop.f32.mrf.mxu0
    %v619 = vadd.f32 0.0, %v618
    %620 = vdwg.mxu0
    %v621 = vmul.f32 %v619, 0.35355338
    %v622 = vsel %vm392, -inf, %v621
    %v623 = vsel %vm415, %v622, -inf
    %624 = vmax.xlane.f32.xlu0 %v623
    %v625 = vpop.xlane.xlu0 %624
    %v626 = vsub.f32 %v622, %v625
    %v627 = vmul.f32 %v626, 1.442695
    %v628 = vpow.pop %v627
    %v629 = vsel %vm415, %v628, 0.0
    %630 = vadd.xlane.f32.xlu0 %v629
    %v631 = vpop.xlane.xlu0 %630
    %v632 = vrcp.pop %v631
    %v633 = vmul.f32 %v631, %v632
    %v634 = vsub.f32 1.0, %v633
    %v635 = vmul.f32 %v632, %v634
    %v636 = vadd.f32 %v632, %v635
    %vm637 = vweird.f32 %v631
    %vm638 = vweird.f32 %v632
    %vm639 = vmor %vm637, %vm638
    %v640 = vsel %vm639, %v632, %v636
    %v641 = vand.u32 2147483647, %v631
    %vm642 = vcmp.eq.f32.partialorder %v641, 8.507059e+37
    %v643 = vand.u32 %v631, 2147483648
    %v644 = vor.u32 1.1754944e-38, %v643
    %v645 = vsel %vm642, %v644, %v640
    %v646 = vmul.f32 %v628, %v645
    %v648 = vsel %vm415, %v646, 0
    %650 = vmatpush.msra.mxu0 0.0
    %651 = vmatpush.msra.mxu0 0.0
    %652 = vmatpush.msra.mxu0 0.0
    %653 = vmatpush.msra.mxu0 0.0
    %654 = vmatpush.msra.mxu0 0.0
    %655 = vmatpush.msra.mxu0 0.0
    %656 = vmatpush.msra.mxu0 0.0
    %657 = vmatpush.msra.mxu0 0.0
    %658 = vmatpush.msra.mxu0 0.0
    %659 = vmatpush.msra.mxu0 0.0
    %660 = vmatpush.msra.mxu0 0.0
    %661 = vmatpush.msra.mxu0 0.0
    %662 = vmatpush.msra.mxu0 0.0
    %663 = vmatpush.msra.mxu0 0.0
    %664 = vmatpush.msra.mxu0 0.0
    %665 = vmatpush.msra.mxu0 %v383
    %666 = vmatmul.f32.gmra.mxu0 %v648
    %v667 = vpop.f32.mrf.mxu0
    %v668 = vadd.f32 0.0, %v667
    %669 = vdwg.mxu0
    %670 = vmatpush.xpose.msra.mxu0 0.0
    %671 = vmatpush.xpose.msra.mxu0 0.0
    %672 = vmatpush.xpose.msra.mxu0 0.0
    %673 = vmatpush.xpose.msra.mxu0 0.0
    %674 = vmatpush.xpose.msra.mxu0 0.0
    %675 = vmatpush.xpose.msra.mxu0 0.0
    %676 = vmatpush.xpose.msra.mxu0 0.0
    %677 = vmatpush.xpose.msra.mxu0 0.0
    %678 = vmatpush.xpose.msra.mxu0 0.0
    %679 = vmatpush.xpose.msra.mxu0 0.0
    %680 = vmatpush.xpose.msra.mxu0 0.0
    %681 = vmatpush.xpose.msra.mxu0 0.0
    %682 = vmatpush.xpose.msra.mxu0 0.0
    %683 = vmatpush.xpose.msra.mxu0 0.0
    %684 = vmatpush.xpose.msra.mxu0 0.0
    %685 = vmatpush.xpose.msra.mxu0 %v225
    %686 = vmatmul.f32.gmra.mxu0 %v133
    %v687 = vpop.f32.mrf.mxu0
    %v688 = vadd.f32 0.0, %v687
    %689 = vdwg.mxu0
    %v690 = vmul.f32 %v688, 0.35355338
    %v691 = vsel %vm392, -inf, %v690
    %v692 = vsel %vm415, %v691, -inf
    %693 = vmax.xlane.f32.xlu0 %v692
    %v694 = vpop.xlane.xlu0 %693
    %v695 = vsub.f32 %v691, %v694
    %v696 = vmul.f32 %v695, 1.442695
    %v697 = vpow.pop %v696
    %v698 = vsel %vm415, %v697, 0.0
    %699 = vadd.xlane.f32.xlu0 %v698
    %v700 = vpop.xlane.xlu0 %699
    %v701 = vrcp.pop %v700
    %v702 = vmul.f32 %v700, %v701
    %v703 = vsub.f32 1.0, %v702
    %v704 = vmul.f32 %v701, %v703
    %v705 = vadd.f32 %v701, %v704
    %vm706 = vweird.f32 %v700
    %vm707 = vweird.f32 %v701
    %vm708 = vmor %vm706, %vm707
    %v709 = vsel %vm708, %v701, %v705
    %v710 = vand.u32 2147483647, %v700
    %vm711 = vcmp.eq.f32.partialorder %v710, 8.507059e+37
    %v712 = vand.u32 %v700, 2147483648
    %v713 = vor.u32 1.1754944e-38, %v712
    %v714 = vsel %vm711, %v713, %v709
    %v715 = vmul.f32 %v697, %v714
    %v717 = vsel %vm415, %v715, 0
    %719 = vmatpush.msra.mxu0 0.0
    %720 = vmatpush.msra.mxu0 0.0
    %721 = vmatpush.msra.mxu0 0.0
    %722 = vmatpush.msra.mxu0 0.0
    %723 = vmatpush.msra.mxu0 0.0
    %724 = vmatpush.msra.mxu0 0.0
    %725 = vmatpush.msra.mxu0 0.0
    %726 = vmatpush.msra.mxu0 0.0
    %727 = vmatpush.msra.mxu0 0.0
    %728 = vmatpush.msra.mxu0 0.0
    %729 = vmatpush.msra.mxu0 0.0
    %730 = vmatpush.msra.mxu0 0.0
    %731 = vmatpush.msra.mxu0 0.0
    %732 = vmatpush.msra.mxu0 0.0
    %733 = vmatpush.msra.mxu0 0.0
    %734 = vmatpush.msra.mxu0 %v317
    %735 = vmatmul.f32.gmra.mxu0 %v717
    %v736 = vpop.f32.mrf.mxu0
    %v737 = vadd.f32 0.0, %v736
    %738 = vdwg.mxu0
    %739 = vmatpush.xpose.msra.mxu0 0.0
    %740 = vmatpush.xpose.msra.mxu0 0.0
    %741 = vmatpush.xpose.msra.mxu0 0.0
    %742 = vmatpush.xpose.msra.mxu0 0.0
    %743 = vmatpush.xpose.msra.mxu0 0.0
    %744 = vmatpush.xpose.msra.mxu0 0.0
    %745 = vmatpush.xpose.msra.mxu0 0.0
    %746 = vmatpush.xpose.msra.mxu0 0.0
    %747 = vmatpush.xpose.msra.mxu0 0.0
    %748 = vmatpush.xpose.msra.mxu0 0.0
    %749 = vmatpush.xpose.msra.mxu0 0.0
    %750 = vmatpush.xpose.msra.mxu0 0.0
    %751 = vmatpush.xpose.msra.mxu0 0.0
    %752 = vmatpush.xpose.msra.mxu0 0.0
    %753 = vmatpush.xpose.msra.mxu0 0.0
    %754 = vmatpush.xpose.msra.mxu0 %v248
    %755 = vmatmul.f32.gmra.mxu0 %v156
    %v756 = vpop.f32.mrf.mxu0
    %v757 = vadd.f32 0.0, %v756
    %758 = vdwg.mxu0
    %v759 = vmul.f32 %v757, 0.35355338
    %v760 = vsel %vm392, -inf, %v759
    %v761 = vsel %vm415, %v760, -inf
    %762 = vmax.xlane.f32.xlu0 %v761
    %v763 = vpop.xlane.xlu0 %762
    %v764 = vsub.f32 %v760, %v763
    %v765 = vmul.f32 %v764, 1.442695
    %v766 = vpow.pop %v765
    %v767 = vsel %vm415, %v766, 0.0
    %768 = vadd.xlane.f32.xlu0 %v767
    %v769 = vpop.xlane.xlu0 %768
    %v770 = vrcp.pop %v769
    %v771 = vmul.f32 %v769, %v770
    %v772 = vsub.f32 1.0, %v771
    %v773 = vmul.f32 %v770, %v772
    %v774 = vadd.f32 %v770, %v773
    %vm775 = vweird.f32 %v769
    %vm776 = vweird.f32 %v770
    %vm777 = vmor %vm775, %vm776
    %v778 = vsel %vm777, %v770, %v774
    %v779 = vand.u32 2147483647, %v769
    %vm780 = vcmp.eq.f32.partialorder %v779, 8.507059e+37
    %v781 = vand.u32 %v769, 2147483648
    %v782 = vor.u32 1.1754944e-38, %v781
    %v783 = vsel %vm780, %v782, %v778
    %v784 = vmul.f32 %v766, %v783
    %v786 = vsel %vm415, %v784, 0
    %788 = vmatpush.msra.mxu0 0.0
    %789 = vmatpush.msra.mxu0 0.0
    %790 = vmatpush.msra.mxu0 0.0
    %791 = vmatpush.msra.mxu0 0.0
    %792 = vmatpush.msra.mxu0 0.0
    %793 = vmatpush.msra.mxu0 0.0
    %794 = vmatpush.msra.mxu0 0.0
    %795 = vmatpush.msra.mxu0 0.0
    %796 = vmatpush.msra.mxu0 0.0
    %797 = vmatpush.msra.mxu0 0.0
    %798 = vmatpush.msra.mxu0 0.0
    %799 = vmatpush.msra.mxu0 0.0
    %800 = vmatpush.msra.mxu0 0.0
    %801 = vmatpush.msra.mxu0 0.0
    %802 = vmatpush.msra.mxu0 0.0
    %803 = vmatpush.msra.mxu0 %v340
    %804 = vmatmul.f32.gmra.mxu0 %v786
    %v805 = vpop.f32.mrf.mxu0
    %v806 = vadd.f32 0.0, %v805
    %807 = vdwg.mxu0
    %808 = vmatpush.xpose.msra.mxu0 0.0
    %809 = vmatpush.xpose.msra.mxu0 0.0
    %810 = vmatpush.xpose.msra.mxu0 0.0
    %811 = vmatpush.xpose.msra.mxu0 0.0
    %812 = vmatpush.xpose.msra.mxu0 0.0
    %813 = vmatpush.xpose.msra.mxu0 0.0
    %814 = vmatpush.xpose.msra.mxu0 0.0
    %815 = vmatpush.xpose.msra.mxu0 0.0
    %816 = vmatpush.xpose.msra.mxu0 0.0
    %817 = vmatpush.xpose.msra.mxu0 0.0
    %818 = vmatpush.xpose.msra.mxu0 0.0
    %819 = vmatpush.xpose.msra.mxu0 0.0
    %820 = vmatpush.xpose.msra.mxu0 0.0
    %821 = vmatpush.xpose.msra.mxu0 0.0
    %822 = vmatpush.xpose.msra.mxu0 0.0
    %823 = vmatpush.xpose.msra.mxu0 %v271
    %824 = vmatmul.f32.gmra.mxu0 %v179
    %v825 = vpop.f32.mrf.mxu0
    %v826 = vadd.f32 0.0, %v825
    %827 = vdwg.mxu0
    %v828 = vmul.f32 %v826, 0.35355338
    %v829 = vsel %vm392, -inf, %v828
    %v830 = vsel %vm415, %v829, -inf
    %831 = vmax.xlane.f32.xlu0 %v830
    %v832 = vpop.xlane.xlu0 %831
    %v833 = vsub.f32 %v829, %v832
    %v834 = vmul.f32 %v833, 1.442695
    %v835 = vpow.pop %v834
    %v836 = vsel %vm415, %v835, 0.0
    %837 = vadd.xlane.f32.xlu0 %v836
    %v838 = vpop.xlane.xlu0 %837
    %v839 = vrcp.pop %v838
    %v840 = vmul.f32 %v838, %v839
    %v841 = vsub.f32 1.0, %v840
    %v842 = vmul.f32 %v839, %v841
    %v843 = vadd.f32 %v839, %v842
    %vm844 = vweird.f32 %v838
    %vm845 = vweird.f32 %v839
    %vm846 = vmor %vm844, %vm845
    %v847 = vsel %vm846, %v839, %v843
    %v848 = vand.u32 2147483647, %v838
    %vm849 = vcmp.eq.f32.partialorder %v848, 8.507059e+37
    %v850 = vand.u32 %v838, 2147483648
    %v851 = vor.u32 1.1754944e-38, %v850
    %v852 = vsel %vm849, %v851, %v847
    %v853 = vmul.f32 %v835, %v852
    %v855 = vsel %vm415, %v853, 0
    %857 = vmatpush.msra.mxu0 0.0
    %858 = vmatpush.msra.mxu0 0.0
    %859 = vmatpush.msra.mxu0 0.0
    %860 = vmatpush.msra.mxu0 0.0
    %861 = vmatpush.msra.mxu0 0.0
    %862 = vmatpush.msra.mxu0 0.0
    %863 = vmatpush.msra.mxu0 0.0
    %864 = vmatpush.msra.mxu0 0.0
    %865 = vmatpush.msra.mxu0 0.0
    %866 = vmatpush.msra.mxu0 0.0
    %867 = vmatpush.msra.mxu0 0.0
    %868 = vmatpush.msra.mxu0 0.0
    %869 = vmatpush.msra.mxu0 0.0
    %870 = vmatpush.msra.mxu0 0.0
    %871 = vmatpush.msra.mxu0 0.0
    %872 = vmatpush.msra.mxu0 %v363
    %873 = vmatmul.f32.gmra.mxu0 %v855
    %v874 = vpop.f32.mrf.mxu0
    %v875 = vadd.f32 0.0, %v874
    %876 = vdwg.mxu0
    %877 = vmatpush.xpose.msra.mxu0 0.0
    %878 = vmatpush.xpose.msra.mxu0 0.0
    %879 = vmatpush.xpose.msra.mxu0 0.0
    %880 = vmatpush.xpose.msra.mxu0 0.0
    %881 = vmatpush.xpose.msra.mxu0 0.0
    %882 = vmatpush.xpose.msra.mxu0 0.0
    %883 = vmatpush.xpose.msra.mxu0 0.0
    %884 = vmatpush.xpose.msra.mxu0 0.0
    %885 = vmatpush.xpose.msra.mxu0 0.0
    %886 = vmatpush.xpose.msra.mxu0 0.0
    %887 = vmatpush.xpose.msra.mxu0 0.0
    %888 = vmatpush.xpose.msra.mxu0 0.0
    %889 = vmatpush.xpose.msra.mxu0 0.0
    %890 = vmatpush.xpose.msra.mxu0 0.0
    %891 = vmatpush.xpose.msra.mxu0 0.0
    %892 = vmatpush.xpose.msra.mxu0 %v294
    %893 = vmatmul.f32.gmra.mxu0 %v202
    %v894 = vpop.f32.mrf.mxu0
    %v895 = vadd.f32 0.0, %v894
    %896 = vdwg.mxu0
    %v897 = vmul.f32 %v895, 0.35355338
    %v898 = vsel %vm392, -inf, %v897
    %v899 = vsel %vm415, %v898, -inf
    %900 = vmax.xlane.f32.xlu0 %v899
    %v901 = vpop.xlane.xlu0 %900
    %v902 = vsub.f32 %v898, %v901
    %v903 = vmul.f32 %v902, 1.442695
    %v904 = vpow.pop %v903
    %v905 = vsel %vm415, %v904, 0.0
    %906 = vadd.xlane.f32.xlu0 %v905
    %v907 = vpop.xlane.xlu0 %906
    %v908 = vrcp.pop %v907
    %v909 = vmul.f32 %v907, %v908
    %v910 = vsub.f32 1.0, %v909
    %v911 = vmul.f32 %v908, %v910
    %v912 = vadd.f32 %v908, %v911
    %vm913 = vweird.f32 %v907
    %vm914 = vweird.f32 %v908
    %vm915 = vmor %vm913, %vm914
    %v916 = vsel %vm915, %v908, %v912
    %v917 = vand.u32 2147483647, %v907
    %vm918 = vcmp.eq.f32.partialorder %v917, 8.507059e+37
    %v919 = vand.u32 %v907, 2147483648
    %v920 = vor.u32 1.1754944e-38, %v919
    %v921 = vsel %vm918, %v920, %v916
    %v922 = vmul.f32 %v904, %v921
    %v924 = vsel %vm415, %v922, 0
    %926 = vmatpush.msra.mxu0 0.0
    %927 = vmatpush.msra.mxu0 0.0
    %928 = vmatpush.msra.mxu0 0.0
    %929 = vmatpush.msra.mxu0 0.0
    %930 = vmatpush.msra.mxu0 0.0
    %931 = vmatpush.msra.mxu0 0.0
    %932 = vmatpush.msra.mxu0 0.0
    %933 = vmatpush.msra.mxu0 0.0
    %934 = vmatpush.msra.mxu0 0.0
    %935 = vmatpush.msra.mxu0 0.0
    %936 = vmatpush.msra.mxu0 0.0
    %937 = vmatpush.msra.mxu0 0.0
    %938 = vmatpush.msra.mxu0 0.0
    %939 = vmatpush.msra.mxu0 0.0
    %940 = vmatpush.msra.mxu0 0.0
    %941 = vmatpush.msra.mxu0 %v386
    %942 = vmatmul.f32.gmra.mxu0 %v924
    %v943 = vpop.f32.mrf.mxu0
    %v944 = vadd.f32 0.0, %v943
    %945 = vdwg.mxu0
    %946 = vmatpush.msra.mxu0 %v56
    %947 = vmatpush.msra.mxu0 %v55
    %948 = vmatpush.msra.mxu0 %v54
    %949 = vmatpush.msra.mxu0 %v53
    %950 = vmatpush.msra.mxu0 %v52
    %951 = vmatpush.msra.mxu0 %v51
    %952 = vmatpush.msra.mxu0 %v50
    %953 = vmatpush.msra.mxu0 %v49
    %954 = vmatpush.msra.mxu0 %v48
    %955 = vmatpush.msra.mxu0 %v47
    %956 = vmatpush.msra.mxu0 %v46
    %957 = vmatpush.msra.mxu0 %v45
    %958 = vmatpush.msra.mxu0 %v44
    %959 = vmatpush.msra.mxu0 %v43
    %960 = vmatpush.msra.mxu0 %v42
    %961 = vmatpush.msra.mxu0 %v41
    %962 = vmatmul.f32.gmra.mxu0 %v461
    %v963 = vpop.f32.mrf.mxu0
    %v964 = vadd.f32 0.0, %v963
    %965 = vmatmul.f32.gmra.mxu0 %v737
    %v966 = vpop.f32.mrf.mxu0
    %v967 = vadd.f32 0.0, %v966
    %968 = vdwg.mxu0
    %969 = vmatpush.msra.mxu0 %v72
    %970 = vmatpush.msra.mxu0 %v71
    %971 = vmatpush.msra.mxu0 %v70
    %972 = vmatpush.msra.mxu0 %v69
    %973 = vmatpush.msra.mxu0 %v68
    %974 = vmatpush.msra.mxu0 %v67
    %975 = vmatpush.msra.mxu0 %v66
    %976 = vmatpush.msra.mxu0 %v65
    %977 = vmatpush.msra.mxu0 %v64
    %978 = vmatpush.msra.mxu0 %v63
    %979 = vmatpush.msra.mxu0 %v62
    %980 = vmatpush.msra.mxu0 %v61
    %981 = vmatpush.msra.mxu0 %v60
    %982 = vmatpush.msra.mxu0 %v59
    %983 = vmatpush.msra.mxu0 %v58
    %984 = vmatpush.msra.mxu0 %v57
    %985 = vmatmul.f32.gmra.mxu0 %v530
    %v986 = vpop.f32.mrf.mxu0
    %v987 = vadd.f32 %v964, %v986
    %988 = vmatmul.f32.gmra.mxu0 %v806
    %v989 = vpop.f32.mrf.mxu0
    %v990 = vadd.f32 %v967, %v989
    %991 = vdwg.mxu0
    %992 = vmatpush.msra.mxu0 %v88
    %993 = vmatpush.msra.mxu0 %v87
    %994 = vmatpush.msra.mxu0 %v86
    %995 = vmatpush.msra.mxu0 %v85
    %996 = vmatpush.msra.mxu0 %v84
    %997 = vmatpush.msra.mxu0 %v83
    %998 = vmatpush.msra.mxu0 %v82
    %999 = vmatpush.msra.mxu0 %v81
    %1000 = vmatpush.msra.mxu0 %v80
    %1001 = vmatpush.msra.mxu0 %v79
    %1002 = vmatpush.msra.mxu0 %v78
    %1003 = vmatpush.msra.mxu0 %v77
    %1004 = vmatpush.msra.mxu0 %v76
    %1005 = vmatpush.msra.mxu0 %v75
    %1006 = vmatpush.msra.mxu0 %v74
    %1007 = vmatpush.msra.mxu0 %v73
    %1008 = vmatmul.f32.gmra.mxu0 %v599
    %v1009 = vpop.f32.mrf.mxu0
    %v1010 = vadd.f32 %v987, %v1009
    %1011 = vmatmul.f32.gmra.mxu0 %v875
    %v1012 = vpop.f32.mrf.mxu0
    %v1013 = vadd.f32 %v990, %v1012
    %1014 = vdwg.mxu0
    %1015 = vmatpush.msra.mxu0 %v104
    %1016 = vmatpush.msra.mxu0 %v103
    %1017 = vmatpush.msra.mxu0 %v102
    %1018 = vmatpush.msra.mxu0 %v101
    %1019 = vmatpush.msra.mxu0 %v100
    %1020 = vmatpush.msra.mxu0 %v99
    %1021 = vmatpush.msra.mxu0 %v98
    %1022 = vmatpush.msra.mxu0 %v97
    %1023 = vmatpush.msra.mxu0 %v96
    %1024 = vmatpush.msra.mxu0 %v95
    %1025 = vmatpush.msra.mxu0 %v94
    %1026 = vmatpush.msra.mxu0 %v93
    %1027 = vmatpush.msra.mxu0 %v92
    %1028 = vmatpush.msra.mxu0 %v91
    %1029 = vmatpush.msra.mxu0 %v90
    %1030 = vmatpush.msra.mxu0 %v89
    %1031 = vmatmul.f32.gmra.mxu0 %v668
    %v1032 = vpop.f32.mrf.mxu0
    %v1033 = vadd.f32 %v1010, %v1032
    %1034 = vmatmul.f32.gmra.mxu0 %v944
    %v1035 = vpop.f32.mrf.mxu0
    %v1036 = vadd.f32 %v1013, %v1035
    %1037 = vdwg.mxu0
    %vm1038 = vcmask 261120
    %1039 = vst.msk [vmem:[#allocation2] sm:$0xff] %vm1038, %v1033
    %1040 = vst.msk [vmem:[#allocation2 + $0x8] sm:$0xff] %vm1038, %v1036
    // Predicated region
    $region14: #{tpu_custom_call.1} parent=1 // pred_check
      _
    $region15: #{tpu_custom_call.1} parent=1 // pred_check_branch
      %1042 = sbr.rel (0) target = $region17
    $region16: #{tpu_custom_call.1} parent=1 // pred_region
      %1044 = vsyncadd [#allocation3], 0
      %s1045 = sshll.u32 [#allocation2], 4
      %s1046 = int_to_ptr.vmem [resolvable:$true] %s1045
      %s1047 = sshll.u32 %s3, 4
      %s1048 = int_to_ptr.hbm [resolvable:$true] %s1047
      %1053 = dma.vmem_to_hbm [thread:$0]  %s1046, 256, %s1048, [#allocation3], 128, 128, 8
    $region17: #{tpu_custom_call.1} parent=1 // pred_fallthru
      _
    // Predicated region
    $region18: #{tpu_custom_call.1} parent=1 // pred_check
      _
    $region19: #{tpu_custom_call.1} parent=1 // pred_check_branch
      %1055 = sbr.rel (0) target = $region21
    $region20: #{tpu_custom_call.1} parent=1 // pred_region
      %1057 = dma.done [#allocation3], 256
    $region21: #{tpu_custom_call.1} parent=1 // pred_fallthru
      _
    %1058 = vsyncpa [#allocation3], 1

</llo_original>
